<compile_context>
chip_gen: v6e
topology: v6e:2x2x1
jax: 0.10.0
libtpu: 0.0.40
codegen_flags: <defaults>
</compile_context>

<pallas_src>
import math

import jax
import jax.numpy as jnp
from jax.experimental import pallas as pl
from jax.experimental.pallas import tpu as pltpu


def _dynamic_linear_kernel(x_ref, w_ref, b_ref, o_ref):
    # x_ref: (TB, TF, D)    compute dtype (bf16)
    # w_ref: (TF, D, OMAX)  compute dtype (bf16)
    # b_ref: (TF, OMAX)     float32
    # o_ref: (TF, TB, OMAX) float32
    acc = jnp.einsum(
        "bfd,fdo->fbo", x_ref[...], w_ref[...],
        preferred_element_type=jnp.float32)            # MXU, f32 accumulation
    o_ref[...] = (acc + b_ref[...][:, None, :]).astype(o_ref.dtype)


def dynamic_linear_layer(x, weights, biases, out_dims, *,
                         feature_tile=None, batch_tile=None,
                         compute_dtype=jnp.bfloat16):
    """x: [B, F, D]; weights: [F, D, OMAX]; biases: [F, OMAX] (f32).

    Returns a list of arrays, element i has shape [B, out_dims[i]] (f32).
    """
    B, F, D = x.shape
    assert weights.shape[0] == F and weights.shape[1] == D
    OMAX = weights.shape[-1]
    assert biases.shape == (F, OMAX)
    assert len(out_dims) == F and max(out_dims) <= OMAX

    TF = F if feature_tile is None else feature_tile
    TB = B if batch_tile is None else batch_tile
    assert F % TF == 0 and B % TB == 0
    # (8,128)-rule on block second-to-last dims: must be full-extent or a
    # multiple of 8 (TF appears as sublane dim of the x block, TB of the out block).
    assert TF == F or TF % 8 == 0
    assert TB == B or TB % 8 == 0

    xc = x.astype(compute_dtype)
    wc = weights.astype(compute_dtype)

    out = pl.pallas_call(
        _dynamic_linear_kernel,
        out_shape=jax.ShapeDtypeStruct((F, B, OMAX), jnp.float32),
        grid_spec=pltpu.PrefetchScalarGridSpec(
            num_scalar_prefetch=0,
            grid=(F // TF, B // TB),      # feature blocks outer, batch inner
            in_specs=[
                # x tiled straight from its [B, F, D] layout (no wrapper transpose).
                pl.BlockSpec((TB, TF, D), lambda f, b: (b, f, 0)),
                # weight block independent of the inner batch index -> resident
                # in VMEM across the batch loop.
                pl.BlockSpec((TF, D, OMAX), lambda f, b: (f, 0, 0)),
                pl.BlockSpec((TF, OMAX), lambda f, b: (f, 0)),
            ],
            out_specs=pl.BlockSpec((TF, TB, OMAX), lambda f, b: (f, b, 0)),
        ),
        compiler_params=pltpu.CompilerParams(
            dimension_semantics=("parallel", "arbitrary")),
    )(xc, wc, biases)

    # Slice each feature's true output width (padded columns are zero weights).
    return [out[i, :, : out_dims[i]] for i in range(F)]


def init_params(key, dim_transformer, out_dims, omax):
    """Deterministic parameter init mirroring the PyTorch module:
    weights: kaiming_uniform_ (a=0)  -> U(-sqrt(6/fan_in), +sqrt(6/fan_in))
    biases : default nn.Linear init  -> U(-1/sqrt(fan_in), +1/sqrt(fan_in))
    Stored as [F, D, OMAX] (transposed vs. PyTorch's [out, in]); padded
    (unused) columns are zero.
    """
    F = len(out_dims)
    W = jnp.zeros((F, dim_transformer, omax), jnp.float32)
    b = jnp.zeros((F, omax), jnp.float32)
    w_bound = math.sqrt(6.0 / dim_transformer)
    b_bound = 1.0 / math.sqrt(dim_transformer)
    for i, od in enumerate(out_dims):
        key, kw, kb = jax.random.split(key, 3)
        wi = jax.random.uniform(kw, (dim_transformer, od),
                                minval=-w_bound, maxval=w_bound,
                                dtype=jnp.float32)
        bi = jax.random.uniform(kb, (od,),
                                minval=-b_bound, maxval=b_bound,
                                dtype=jnp.float32)
        W = W.at[i, :, :od].set(wi)
        b = b.at[i, :od].set(bi)
    return W, b


if __name__ == "__main__":
    # config / EncodedInfo (synthetic, small)
    dim_transformer = 32
    bins = 4
    num_continuous_features = 2
    num_categories = [3, 5]
    out_dims = [bins] * num_continuous_features + list(num_categories)
    F = len(out_dims)
    batch = 2
    # Small per-feature output padding (multiple of 8), NOT 128 -- weight
    # traffic is the roofline for this layer.
    OMAX = max(8, -(-max(out_dims) // 8) * 8)

    key = jax.random.PRNGKey(0)
    key, kx = jax.random.split(key)
    x = jax.random.normal(kx, (batch, F, dim_transformer), dtype=jnp.float32)

    W, b = init_params(key, dim_transformer, out_dims, OMAX)

    outs = dynamic_linear_layer(x, W, b, out_dims)
    outs = [jax.block_until_ready(o) for o in outs]

    # Reference check: (1) exact-path reference with the same bf16 inputs /
    # f32 accumulation as the kernel; (2) loose check vs. the pure-f32 module.
    xb = x.astype(jnp.bfloat16)
    Wb = W.astype(jnp.bfloat16)
    ok = True
    for i, od in enumerate(out_dims):
        ref_bf16 = jnp.dot(xb[:, i, :], Wb[i, :, :od],
                           preferred_element_type=jnp.float32) + b[i, :od]
        ref_f32 = x[:, i, :] @ W[i, :, :od] + b[i, :od]
        ok = ok and outs[i].shape == (batch, od)
        ok = ok and bool(jnp.allclose(outs[i], ref_bf16, atol=1e-4, rtol=1e-4))
        ok = ok and bool(jnp.allclose(outs[i], ref_f32, atol=1e-1, rtol=1e-1))
    print("KERNEL_OK" if ok else "MISMATCH")
</pallas_src>

<mosaic_0001>
module attributes {stable_mosaic.version = 11 : i64} {
  func.func @_dynamic_linear_kernel(%arg0: i32, %arg1: i32, %arg2: memref<2x4x32xbf16, #tpu.memory_space<vmem>>, %arg3: memref<4x32x8xbf16, #tpu.memory_space<vmem>>, %arg4: memref<4x8xf32, #tpu.memory_space<vmem>>, %arg5: memref<4x2x8xf32, #tpu.memory_space<vmem>>) attributes {dimension_semantics = [#tpu.dimension_semantics<parallel>, #tpu.dimension_semantics<arbitrary>], iteration_bounds = array<i64: 1, 1>, scalar_prefetch = 0 : i64, scratch_operands = 0 : i64, tpu.core_type = #tpu.core_type<tc>, window_params = [{transform_indices = @transform_0, window_bounds = array<i64: 2, 4, 32>}, {transform_indices = @transform_1, window_bounds = array<i64: 4, 32, 8>}, {transform_indices = @transform_2, window_bounds = array<i64: 4, 8>}, {transform_indices = @transform_3, window_bounds = array<i64: 4, 2, 8>}]} {
    %c0 = arith.constant 0 : index
    %c0_0 = arith.constant 0 : index
    %c0_1 = arith.constant 0 : index
    %0 = vector.load %arg2[%c0, %c0_0, %c0_1] : memref<2x4x32xbf16, #tpu.memory_space<vmem>>, vector<2x4x32xbf16>
    %c0_2 = arith.constant 0 : index
    %c0_3 = arith.constant 0 : index
    %c0_4 = arith.constant 0 : index
    %1 = vector.load %arg3[%c0_2, %c0_3, %c0_4] : memref<4x32x8xbf16, #tpu.memory_space<vmem>>, vector<4x32x8xbf16>
    "tpu.trace_start"() <{level = 10 : i32, message = "bfd,fdo->fbo"}> : () -> ()
    %cst = arith.constant dense<0.000000e+00> : vector<4x2x8xf32>
    %2 = tpu.matmul %0, %1, %cst {dimension_numbers = #tpu.dot_dimension_numbers<[2], [1], [0], [2], [0, 1, 0, 0, 1, 2], [1], [0]>} : vector<2x4x32xbf16>, vector<4x32x8xbf16>, vector<4x2x8xf32> -> vector<4x2x8xf32>
    "tpu.trace_stop"() : () -> ()
    %c0_5 = arith.constant 0 : index
    %c0_6 = arith.constant 0 : index
    %3 = vector.load %arg4[%c0_5, %c0_6] : memref<4x8xf32, #tpu.memory_space<vmem>>, vector<4x8xf32>
    %4 = vector.shape_cast %3 : vector<4x8xf32> to vector<4x1x8xf32>
    %5 = vector.broadcast %4 : vector<4x1x8xf32> to vector<4x2x8xf32>
    %6 = arith.addf %2, %5 : vector<4x2x8xf32>
    %c0_7 = arith.constant 0 : index
    %c0_8 = arith.constant 0 : index
    %c0_9 = arith.constant 0 : index
    %7 = vector.load %arg5[%c0_7, %c0_8, %c0_9] : memref<4x2x8xf32, #tpu.memory_space<vmem>>, vector<4x2x8xf32>
    tpu.vector_store %arg5[%c0_7, %c0_8, %c0_9], %6 {strides = array<i32>} : memref<4x2x8xf32, #tpu.memory_space<vmem>>, vector<4x2x8xf32>,
    return
  }
  func.func @transform_0(%arg0: i32, %arg1: i32) -> (i32, i32, i32) {
    %c0_i32 = arith.constant 0 : i32
    %c0_i32_0 = arith.constant 0 : i32
    return %arg1, %arg0, %c0_i32 : i32, i32, i32
  }
  func.func @transform_1(%arg0: i32, %arg1: i32) -> (i32, i32, i32) {
    %c0_i32 = arith.constant 0 : i32
    %c0_i32_0 = arith.constant 0 : i32
    %c0_i32_1 = arith.constant 0 : i32
    return %arg0, %c0_i32, %c0_i32_0 : i32, i32, i32
  }
  func.func @transform_2(%arg0: i32, %arg1: i32) -> (i32, i32) {
    %c0_i32 = arith.constant 0 : i32
    %c0_i32_0 = arith.constant 0 : i32
    return %arg0, %c0_i32 : i32, i32
  }
  func.func @transform_3(%arg0: i32, %arg1: i32) -> (i32, i32, i32) {
    %c0_i32 = arith.constant 0 : i32
    %c0_i32_0 = arith.constant 0 : i32
    return %arg0, %arg1, %c0_i32 : i32, i32, i32
  }
}

</mosaic_0001>

<llo_original>
// kernel: tpu_custom_call.1
$region0: #{tpu_custom_call.1}
  #allocation0 [shape = 'u32[]', space=smem, size = 0x4, offset = 0x4, fixed_abs, tag = 'smem constant byte address 0x4 - core index']
  #allocation1 [shape = 'u32[144,128]{1,0:T(1,128)}', space=vmem, size = 0x12000, scoped, tag = 'internal scratch']
  %s0 = inlined_call_operand.vmem [shape: bf16[2,4,32], index: 0, kind: input, shape index: {}]
  %s1 = inlined_call_operand.vmem [shape: bf16[4,32,8], index: 1, kind: input, shape index: {}]
  %s2 = inlined_call_operand.vmem [shape: f32[4,8], index: 2, kind: input, shape index: {}]
  %s3 = inlined_call_operand.hbm [shape: f32[4,2,8], index: 3, kind: output, shape index: {}]
  %s4 = sld [smem:[#allocation0]]
  $region22: #{tpu_custom_call.1} parent=0
    _
  %s6 = ssub.s32 1, %s4
  %s7 = scalar_select 0, %s6, %s4
  $region1: #{tpu_custom_call.1} parent=0
    #allocation2 [shape = 'u8[4096]{0}', space=vmem, size = 0x1000, scoped, tag = 'output window, operand 0, single buffered']
    #allocation3 [shape = 's32[1]{0}', space=sflag, size = 0x4, scoped, tag = 'scoped memory for tpu_custom_call.1']
    %8 = vsyncpa [#allocation3], 0
    // Predicated region
    $region2: #{tpu_custom_call.1} parent=1 // pred_check
      _
    $region3: #{tpu_custom_call.1} parent=1 // pred_check_branch
      %10 = sbr.rel (0) target = $region5
    $region4: #{tpu_custom_call.1} parent=1 // pred_region
      _
    $region5: #{tpu_custom_call.1} parent=1 // pred_fallthru
      _
    // Predicated region
    $region6: #{tpu_custom_call.1} parent=1 // pred_check
      _
    $region7: #{tpu_custom_call.1} parent=1 // pred_check_branch
      %12 = sbr.rel (0) target = $region9
    $region8: #{tpu_custom_call.1} parent=1 // pred_region
      _
    $region9: #{tpu_custom_call.1} parent=1 // pred_fallthru
      _
    // Predicated region
    $region10: #{tpu_custom_call.1} parent=1 // pred_check
      _
    $region11: #{tpu_custom_call.1} parent=1 // pred_check_branch
      %14 = sbr.rel (0) target = $region13
    $region12: #{tpu_custom_call.1} parent=1 // pred_region
      _
    $region13: #{tpu_custom_call.1} parent=1 // pred_fallthru
      _
    %v16 = vld [vmem:[%s0] sm:$0x3]
    %v17 = vld [vmem:[%s0 + $0x2] sm:$0x3]
    %v18 = vld [vmem:[%s1] sm:$0xf]
    %v19 = vld [vmem:[%s1 + $0x4] sm:$0xf]
    %v20 = vld [vmem:[%s1 + $0x8] sm:$0xf]
    %v21 = vld [vmem:[%s1 + $0xc] sm:$0xf]
    %v22 = vld [vmem:[%s1 + $0x10] sm:$0xf]
    %v23 = vld [vmem:[%s1 + $0x14] sm:$0xf]
    %v24 = vld [vmem:[%s1 + $0x18] sm:$0xf]
    %v25 = vld [vmem:[%s1 + $0x1c] sm:$0xf]
    %v26 = vld [vmem:[%s1 + $0x20] sm:$0xf]
    %v27 = vld [vmem:[%s1 + $0x24] sm:$0xf]
    %v28 = vld [vmem:[%s1 + $0x28] sm:$0xf]
    %v29 = vld [vmem:[%s1 + $0x2c] sm:$0xf]
    %v30 = vld [vmem:[%s1 + $0x30] sm:$0xf]
    %v31 = vld [vmem:[%s1 + $0x34] sm:$0xf]
    %v32 = vld [vmem:[%s1 + $0x38] sm:$0xf]
    %v33 = vld [vmem:[%s1 + $0x3c] sm:$0xf]
    %v34 = vld [vmem:[%s2] sm:$0xf]
    %v37 = vunpack.c.l.s4 1966171168
    %v38 = vunpack.c.0.s8 %v37
    %v39 = vlaneseq
    %v40 = vshrl.u32 %v39, 7
    %v41 = vsub.s32 %v38, %v40
    %v42 = vrot.slane %v34, %v41
    %v43 = vcombine.high %v42, %v42
    %v45 = vunpack.c.l.s4 1966171168
    %v46 = vunpack.c.0.s8 %v45
    %v47 = vlaneseq
    %v48 = vshrl.u32 %v47, 7
    %v49 = vsub.s32 %v46, %v48
    %v50 = vrot.slane %v42, %v49
    %v52 = vunpack.c.l.s4 1966171168
    %v53 = vunpack.c.0.s8 %v52
    %v54 = vlaneseq
    %v55 = vshrl.u32 %v54, 7
    %v56 = vsub.s32 %v53, %v55
    %v57 = vrot.slane %v43, %v56
    %v58 = vcombine.high %v50, %v50
    %v59 = vcombine.high %v57, %v57
    %v60 = vlaneseq
    %v61 = vshrl.u32 %v60, 7
    %v62 = vsub.s32 0, %v61
    %v63 = vrot.slane %v50, %v62
    %v64 = vlaneseq
    %v65 = vshrl.u32 %v64, 7
    %v66 = vsub.s32 0, %v65
    %v67 = vrot.slane %v57, %v66
    %v68 = vlaneseq
    %v69 = vshrl.u32 %v68, 7
    %v70 = vsub.s32 0, %v69
    %v71 = vrot.slane %v58, %v70
    %v72 = vlaneseq
    %v73 = vshrl.u32 %v72, 7
    %v74 = vsub.s32 0, %v73
    %v75 = vrot.slane %v59, %v74
    %v82 = vpack.i.b16 %v17, %v16
    %v83 = vshrl.u32 %v16, 16
    %v84 = vshrl.u32 %v17, 16
    %v85 = vpack.i.b16 %v84, %v83
    %v88 = vunpack.c.l.s4 1934713408
    %v89 = vunpack.c.0.s8 %v88
    %v90 = vlaneseq
    %v91 = vshrl.u32 %v90, 7
    %v92 = vsub.s32 %v89, %v91
    %v93 = vrot.slane %v82, %v92
    %v94 = vcombine.high %v93, 0
    %v97 = vunpack.c.l.s4 1934713408
    %v98 = vunpack.c.0.s8 %v97
    %v99 = vlaneseq
    %v100 = vshrl.u32 %v99, 7
    %v101 = vsub.s32 %v98, %v100
    %v102 = vrot.slane %v85, %v101
    %v103 = vcombine.high %v102, 0
    %v108 = vunpack.c.l.b16 %v18
    %v109 = vunpack.c.l.b16 %v19
    %v110 = vunpack.c.l.b16 %v20
    %v111 = vunpack.c.l.b16 %v21
    %v112 = vpack.c.b16 %v109, %v108
    %v113 = vpack.c.b16 %v111, %v110
    %vm116 = vcmask 261120
    %v118 = vsel %vm116, %v93, 0
    %120 = vmatprep.subr.bf16.mxu0 0
    %121 = vmatpush1.bf16.msra.mxu0 0
    %122 = vmatprep.subr.bf16.mxu0 0
    %123 = vmatpush1.bf16.msra.mxu0 0
    %124 = vmatprep.subr.bf16.mxu0 0
    %125 = vmatpush1.bf16.msra.mxu0 0
    %126 = vmatprep.subr.bf16.mxu0 0
    %127 = vmatpush1.bf16.msra.mxu0 0
    %128 = vmatprep.subr.bf16.mxu0 0
    %129 = vmatpush1.bf16.msra.mxu0 0
    %130 = vmatprep.subr.bf16.mxu0 0
    %131 = vmatpush1.bf16.msra.mxu0 0
    %132 = vmatprep.subr.bf16.mxu0 0
    %133 = vmatpush1.bf16.msra.mxu0 %v113
    %134 = vmatprep.subr.bf16.mxu0 0
    %135 = vmatpush1.bf16.msra.mxu0 %v112
    %136 = vmatprep.subr.bf16.mxu0 0
    %137 = vmatpush2.bf16.msra.mxu0 0
    %138 = vmatprep.subr.bf16.mxu0 0
    %139 = vmatpush2.bf16.msra.mxu0 0
    %140 = vmatprep.subr.bf16.mxu0 0
    %141 = vmatpush2.bf16.msra.mxu0 0
    %142 = vmatprep.subr.bf16.mxu0 0
    %143 = vmatpush2.bf16.msra.mxu0 0
    %144 = vmatprep.subr.bf16.mxu0 0
    %145 = vmatpush2.bf16.msra.mxu0 0
    %146 = vmatprep.subr.bf16.mxu0 0
    %147 = vmatpush2.bf16.msra.mxu0 0
    %148 = vmatprep.subr.bf16.mxu0 0
    %149 = vmatpush2.bf16.msra.mxu0 0
    %150 = vmatprep.subr.bf16.mxu0 0
    %151 = vmatpush2.bf16.msra.mxu0 0
    %152 = vmatprep.mubr.bf16.mxu0 0
    %153 = vmatmul.mubr.bf16.gmra.mxu0 %v118
    %v154 = vpop.f32.mrf.mxu0
    %v155 = vadd.f32 %v63, %v154
    %v156 = vpop.f32.mrf.mxu0
    %v157 = vpop.f32.mrf.mxu0
    %v158 = vpop.f32.mrf.mxu0
    %159 = vdwg.mxu0
    %v164 = vunpack.c.l.b16 %v22
    %v165 = vunpack.c.l.b16 %v23
    %v166 = vunpack.c.l.b16 %v24
    %v167 = vunpack.c.l.b16 %v25
    %v168 = vpack.c.b16 %v165, %v164
    %v169 = vpack.c.b16 %v167, %v166
    %v173 = vsel %vm116, %v102, 0
    %175 = vmatprep.subr.bf16.mxu0 0
    %176 = vmatpush1.bf16.msra.mxu0 0
    %177 = vmatprep.subr.bf16.mxu0 0
    %178 = vmatpush1.bf16.msra.mxu0 0
    %179 = vmatprep.subr.bf16.mxu0 0
    %180 = vmatpush1.bf16.msra.mxu0 0
    %181 = vmatprep.subr.bf16.mxu0 0
    %182 = vmatpush1.bf16.msra.mxu0 0
    %183 = vmatprep.subr.bf16.mxu0 0
    %184 = vmatpush1.bf16.msra.mxu0 0
    %185 = vmatprep.subr.bf16.mxu0 0
    %186 = vmatpush1.bf16.msra.mxu0 0
    %187 = vmatprep.subr.bf16.mxu0 0
    %188 = vmatpush1.bf16.msra.mxu0 %v169
    %189 = vmatprep.subr.bf16.mxu0 0
    %190 = vmatpush1.bf16.msra.mxu0 %v168
    %191 = vmatprep.subr.bf16.mxu0 0
    %192 = vmatpush2.bf16.msra.mxu0 0
    %193 = vmatprep.subr.bf16.mxu0 0
    %194 = vmatpush2.bf16.msra.mxu0 0
    %195 = vmatprep.subr.bf16.mxu0 0
    %196 = vmatpush2.bf16.msra.mxu0 0
    %197 = vmatprep.subr.bf16.mxu0 0
    %198 = vmatpush2.bf16.msra.mxu0 0
    %199 = vmatprep.subr.bf16.mxu0 0
    %200 = vmatpush2.bf16.msra.mxu0 0
    %201 = vmatprep.subr.bf16.mxu0 0
    %202 = vmatpush2.bf16.msra.mxu0 0
    %203 = vmatprep.subr.bf16.mxu0 0
    %204 = vmatpush2.bf16.msra.mxu0 0
    %205 = vmatprep.subr.bf16.mxu0 0
    %206 = vmatpush2.bf16.msra.mxu0 0
    %207 = vmatprep.mubr.bf16.mxu0 0
    %208 = vmatmul.mubr.bf16.gmra.mxu0 %v173
    %v209 = vpop.f32.mrf.mxu0
    %v210 = vadd.f32 %v67, %v209
    %v211 = vpop.f32.mrf.mxu0
    %v212 = vpop.f32.mrf.mxu0
    %v213 = vpop.f32.mrf.mxu0
    %214 = vdwg.mxu0
    %v219 = vunpack.c.l.b16 %v26
    %v220 = vunpack.c.l.b16 %v27
    %v221 = vunpack.c.l.b16 %v28
    %v222 = vunpack.c.l.b16 %v29
    %v223 = vpack.c.b16 %v220, %v219
    %v224 = vpack.c.b16 %v222, %v221
    %v228 = vsel %vm116, %v94, 0
    %230 = vmatprep.subr.bf16.mxu0 0
    %231 = vmatpush1.bf16.msra.mxu0 0
    %232 = vmatprep.subr.bf16.mxu0 0
    %233 = vmatpush1.bf16.msra.mxu0 0
    %234 = vmatprep.subr.bf16.mxu0 0
    %235 = vmatpush1.bf16.msra.mxu0 0
    %236 = vmatprep.subr.bf16.mxu0 0
    %237 = vmatpush1.bf16.msra.mxu0 0
    %238 = vmatprep.subr.bf16.mxu0 0
    %239 = vmatpush1.bf16.msra.mxu0 0
    %240 = vmatprep.subr.bf16.mxu0 0
    %241 = vmatpush1.bf16.msra.mxu0 0
    %242 = vmatprep.subr.bf16.mxu0 0
    %243 = vmatpush1.bf16.msra.mxu0 %v224
    %244 = vmatprep.subr.bf16.mxu0 0
    %245 = vmatpush1.bf16.msra.mxu0 %v223
    %246 = vmatprep.subr.bf16.mxu0 0
    %247 = vmatpush2.bf16.msra.mxu0 0
    %248 = vmatprep.subr.bf16.mxu0 0
    %249 = vmatpush2.bf16.msra.mxu0 0
    %250 = vmatprep.subr.bf16.mxu0 0
    %251 = vmatpush2.bf16.msra.mxu0 0
    %252 = vmatprep.subr.bf16.mxu0 0
    %253 = vmatpush2.bf16.msra.mxu0 0
    %254 = vmatprep.subr.bf16.mxu0 0
    %255 = vmatpush2.bf16.msra.mxu0 0
    %256 = vmatprep.subr.bf16.mxu0 0
    %257 = vmatpush2.bf16.msra.mxu0 0
    %258 = vmatprep.subr.bf16.mxu0 0
    %259 = vmatpush2.bf16.msra.mxu0 0
    %260 = vmatprep.subr.bf16.mxu0 0
    %261 = vmatpush2.bf16.msra.mxu0 0
    %262 = vmatprep.mubr.bf16.mxu0 0
    %263 = vmatmul.mubr.bf16.gmra.mxu0 %v228
    %v264 = vpop.f32.mrf.mxu0
    %v265 = vadd.f32 %v71, %v264
    %v266 = vpop.f32.mrf.mxu0
    %v267 = vpop.f32.mrf.mxu0
    %v268 = vpop.f32.mrf.mxu0
    %269 = vdwg.mxu0
    %v274 = vunpack.c.l.b16 %v30
    %v275 = vunpack.c.l.b16 %v31
    %v276 = vunpack.c.l.b16 %v32
    %v277 = vunpack.c.l.b16 %v33
    %v278 = vpack.c.b16 %v275, %v274
    %v279 = vpack.c.b16 %v277, %v276
    %v283 = vsel %vm116, %v103, 0
    %285 = vmatprep.subr.bf16.mxu0 0
    %286 = vmatpush1.bf16.msra.mxu0 0
    %287 = vmatprep.subr.bf16.mxu0 0
    %288 = vmatpush1.bf16.msra.mxu0 0
    %289 = vmatprep.subr.bf16.mxu0 0
    %290 = vmatpush1.bf16.msra.mxu0 0
    %291 = vmatprep.subr.bf16.mxu0 0
    %292 = vmatpush1.bf16.msra.mxu0 0
    %293 = vmatprep.subr.bf16.mxu0 0
    %294 = vmatpush1.bf16.msra.mxu0 0
    %295 = vmatprep.subr.bf16.mxu0 0
    %296 = vmatpush1.bf16.msra.mxu0 0
    %297 = vmatprep.subr.bf16.mxu0 0
    %298 = vmatpush1.bf16.msra.mxu0 %v279
    %299 = vmatprep.subr.bf16.mxu0 0
    %300 = vmatpush1.bf16.msra.mxu0 %v278
    %301 = vmatprep.subr.bf16.mxu0 0
    %302 = vmatpush2.bf16.msra.mxu0 0
    %303 = vmatprep.subr.bf16.mxu0 0
    %304 = vmatpush2.bf16.msra.mxu0 0
    %305 = vmatprep.subr.bf16.mxu0 0
    %306 = vmatpush2.bf16.msra.mxu0 0
    %307 = vmatprep.subr.bf16.mxu0 0
    %308 = vmatpush2.bf16.msra.mxu0 0
    %309 = vmatprep.subr.bf16.mxu0 0
    %310 = vmatpush2.bf16.msra.mxu0 0
    %311 = vmatprep.subr.bf16.mxu0 0
    %312 = vmatpush2.bf16.msra.mxu0 0
    %313 = vmatprep.subr.bf16.mxu0 0
    %314 = vmatpush2.bf16.msra.mxu0 0
    %315 = vmatprep.subr.bf16.mxu0 0
    %316 = vmatpush2.bf16.msra.mxu0 0
    %317 = vmatprep.mubr.bf16.mxu0 0
    %318 = vmatmul.mubr.bf16.gmra.mxu0 %v283
    %v319 = vpop.f32.mrf.mxu0
    %v320 = vadd.f32 %v75, %v319
    %v321 = vpop.f32.mrf.mxu0
    %v322 = vpop.f32.mrf.mxu0
    %v323 = vpop.f32.mrf.mxu0
    %324 = vdwg.mxu0
    %vm325 = vcmask 58368
    %326 = vst.msk [vmem:[#allocation2] sm:$0x3] %vm325, %v155
    %327 = vst.msk [vmem:[#allocation2 + $0x2] sm:$0x3] %vm325, %v210
    %328 = vst.msk [vmem:[#allocation2 + $0x4] sm:$0x3] %vm325, %v265
    %329 = vst.msk [vmem:[#allocation2 + $0x6] sm:$0x3] %vm325, %v320
    // Predicated region
    $region14: #{tpu_custom_call.1} parent=1 // pred_check
      _
    $region15: #{tpu_custom_call.1} parent=1 // pred_check_branch
      %331 = sbr.rel (0) target = $region17
    $region16: #{tpu_custom_call.1} parent=1 // pred_region
      %s333 = ssub.s32 128, 128
      %334 = vsyncadd [#allocation3], %s333
      %s335 = sshll.u32 [#allocation2], 4
      %s336 = int_to_ptr.vmem [resolvable:$true] %s335
      %341 = dma.vmem_to_hbm [thread:$0]  %s336, 128, %s3, [#allocation3], 32, 32, 2
    $region17: #{tpu_custom_call.1} parent=1 // pred_fallthru
      _
    // Predicated region
    $region18: #{tpu_custom_call.1} parent=1 // pred_check
      _
    $region19: #{tpu_custom_call.1} parent=1 // pred_check_branch
      %343 = sbr.rel (0) target = $region21
    $region20: #{tpu_custom_call.1} parent=1 // pred_region
      %344 = dma.done [#allocation3], 128
    $region21: #{tpu_custom_call.1} parent=1 // pred_fallthru
      _
    %345 = vsyncpa [#allocation3], 1

</llo_original>
